<compile_context>
chip_gen: v7x
topology: tpu7x:2x2x1
jax: 0.10.0
libtpu: 0.0.40
codegen_flags: <defaults>
</compile_context>

<pallas_src>
import functools

import jax
import jax.numpy as jnp
import numpy as np
from jax import lax
from jax.experimental import pallas as pl
from jax.experimental.pallas import tpu as pltpu


# ------------------------- generation-aware budgets ------------------------- #

def _tpu_vmem_capacity_bytes():
    try:
        return int(pltpu.get_tpu_info().vmem_capacity_bytes)
    except Exception:
        return 64 * 1024 * 1024        # conservative fallback (v7x-sized)


_VMEM_CAPACITY = _tpu_vmem_capacity_bytes()
_VMEM_LIMIT = min((_VMEM_CAPACITY * 3) // 4, 96 * 1024 * 1024)   # 96M v5e/v6e, 48M v7x
_DEFAULT_BLOCK_ROWS = 512 if _VMEM_CAPACITY >= 96 * 1024 * 1024 else 256
_MIN_GRID_STEPS = 8      # >= 4 steps per TensorCore on v7x's dual-core chips


def _block_spec(block_shape, index_map, *, buffers=None):
    """pl.BlockSpec, optionally with an explicit pipeline buffer count."""
    if buffers is not None and hasattr(pl, "Buffered"):
        try:
            return pl.BlockSpec(block_shape, index_map,
                                pipeline_mode=pl.Buffered(buffers))
        except Exception:
            pass
    return pl.BlockSpec(block_shape, index_map)


# ------------------------- fused multi-output linear ------------------------ #

def _fused_linear_kernel(x_ref, w_ref, b_ref, *o_refs):
    # x: [bm, Ein]; w: [n_out*Eout, Ein] (native nn.Linear layout, contracted on
    # dim 1 so W never needs an in-kernel transpose); b: [1, n_out*Eout].
    x = x_ref[...]
    e_out = o_refs[0].shape[-1]
    for i, o_ref in enumerate(o_refs):
        w_i = w_ref[i * e_out:(i + 1) * e_out, :]   # resident-weight sublane slice
        b_i = b_ref[:, i * e_out:(i + 1) * e_out]
        y = lax.dot_general(x, w_i, (((1,), (1,)), ((), ())),
                            preferred_element_type=jnp.float32)
        o_ref[...] = (y + b_i).astype(o_ref.dtype)


def _fused_linear(x, w, b, *, n_out=1, block_rows=None):
    """Returns (y_0, ..., y_{n-1}) with y_i = x @ w[i*E:(i+1)*E].T + b[i*E:(i+1)*E].

    Row-tiled over N (double-buffered HBM<->VMEM pipeline); the fused weight and
    bias stay VMEM resident and single-buffered across grid steps.
    """
    n, e_in = x.shape
    e_tot = w.shape[0]
    e_out = e_tot // n_out
    block_rows = block_rows or _DEFAULT_BLOCK_ROWS
    bm = n if n <= block_rows else block_rows
    grid = (pl.cdiv(n, bm),)
    res = pl.pallas_call(
        _fused_linear_kernel,
        out_shape=tuple(jax.ShapeDtypeStruct((n, e_out), x.dtype)
                        for _ in range(n_out)),
        grid=grid,
        in_specs=[
            pl.BlockSpec((bm, e_in), lambda i: (i, 0)),
            _block_spec((e_tot, e_in), lambda i: (0, 0), buffers=1),   # resident W
            _block_spec((1, e_tot), lambda i: (0, 0), buffers=1),      # resident b
        ],
        out_specs=tuple(pl.BlockSpec((bm, e_out), lambda i: (i, 0))
                        for _ in range(n_out)),
        compiler_params=pltpu.CompilerParams(
            dimension_semantics=("parallel",),
            vmem_limit_bytes=_VMEM_LIMIT),
    )(x, w, b.reshape(1, e_tot))
    if not isinstance(res, (list, tuple)):
        res = (res,)
    return tuple(res)


# ------------------------------ attention core ------------------------------ #

def _attention_kernel(q_ref, k_ref, v_ref, *o_refs, scale, group, head_dim):
    # One (batch, head-group) tile per grid step.
    # q: [1, T, G*Dh], k/v: [1, S, G*Dh].  The context is written back as a
    # lane-dense [T, G*Dh] slab of a [B, T, E] output (no masked Dh-wide stores).
    o_ref = o_refs[0]
    w_ref = o_refs[1] if len(o_refs) > 1 else None
    q = q_ref[0]
    k = k_ref[0]
    v = v_ref[0]
    ctx_parts = []
    for h in range(group):                       # static unroll over heads in group
        sl = slice(h * head_dim, (h + 1) * head_dim)
        qh, kh, vh = q[:, sl], k[:, sl], v[:, sl]
        scores = lax.dot_general(qh, kh, (((1,), (1,)), ((), ())),
                                 preferred_element_type=jnp.float32) * scale  # [T,S]
        m = jnp.max(scores, axis=-1, keepdims=True)
        e = jnp.exp(scores - m)
        den = jnp.sum(e, axis=-1, keepdims=True)
        # EUP approximate reciprocal + one Newton step: exact-softmax parity
        # (bare approx=True caused the previous ~1e-3 output mismatch).
        r = pl.reciprocal(den, approx=True)
        r = r * (2.0 - den * r)
        probs = e * r
        ctx_parts.append(
            lax.dot_general(probs.astype(vh.dtype), vh, (((1,), (0,)), ((), ())),
                            preferred_element_type=jnp.float32))             # [T,Dh]
        if w_ref is not None:
            w_ref[0, h] = probs.astype(w_ref.dtype)
    o_ref[0] = jnp.concatenate(ctx_parts, axis=-1).astype(o_ref.dtype)


def _pick_head_group(num_heads, head_dim, bsz, tgt, src, itemsize,
                     output_attentions):
    """Heads per grid step.  G must keep the lane window legal
    (G*Dh % 128 == 0 or G == num_heads), fit the VMEM budget, and ideally leave
    >= _MIN_GRID_STEPS grid steps for pipelining / the v7x dual TensorCore."""
    candidates = [g for g in range(1, num_heads + 1)
                  if num_heads % g == 0
                  and ((g * head_dim) % 128 == 0 or g == num_heads)]
    budget = _VMEM_LIMIT // 2

    def fits(g):
        gdh = g * head_dim
        qkv = 2 * (tgt + 2 * src) * gdh * itemsize       # double-buffered q,k,v
        out = 2 * tgt * gdh * itemsize
        inter = 4 * tgt * src * 4 + g * tgt * head_dim * 4
        if output_attentions:
            out += 2 * g * tgt * src * itemsize
        return qkv + out + inter <= budget

    fitting = [g for g in candidates if fits(g)] or candidates[:1]
    enough_steps = [g for g in fitting
                    if bsz * (num_heads // g) >= _MIN_GRID_STEPS]
    return max(enough_steps or fitting)


def _attention(q, k, v, *, scale, num_heads, head_dim, output_attentions):
    """q: [B,T,E], k/v: [B,S,E] -> (ctx [B,T,E], attn_weights [B,H,T,S] | None)."""
    bsz, tgt, e = q.shape
    src = k.shape[1]
    g = _pick_head_group(num_heads, head_dim, bsz, tgt, src,
                         q.dtype.itemsize, output_attentions)
    gdh = g * head_dim
    grid = (bsz, num_heads // g)

    in_specs = [
        pl.BlockSpec((1, tgt, gdh), lambda b, h: (b, 0, h)),
        pl.BlockSpec((1, src, gdh), lambda b, h: (b, 0, h)),
        pl.BlockSpec((1, src, gdh), lambda b, h: (b, 0, h)),
    ]
    out_shape = [jax.ShapeDtypeStruct((bsz, tgt, e), q.dtype)]
    out_specs = [pl.BlockSpec((1, tgt, gdh), lambda b, h: (b, 0, h))]
    if output_attentions:
        # Weights emitted in the compute dtype (not f32) to halve the writeback.
        out_shape.append(jax.ShapeDtypeStruct((bsz, num_heads, tgt, src), q.dtype))
        out_specs.append(pl.BlockSpec((1, g, tgt, src), lambda b, h: (b, h, 0, 0)))

    kernel = functools.partial(_attention_kernel, scale=scale, group=g,
                               head_dim=head_dim)
    res = pl.pallas_call(
        kernel,
        out_shape=tuple(out_shape),
        grid=grid,
        in_specs=in_specs,
        out_specs=tuple(out_specs),
        compiler_params=pltpu.CompilerParams(
            dimension_semantics=("parallel", "parallel"),
            vmem_limit_bytes=_VMEM_LIMIT),
    )(q, k, v)
    if not isinstance(res, (list, tuple)):
        res = (res,)
    if output_attentions:
        return res[0], res[1]
    return res[0], None


# -------------------------- module-level wrapper ----------------------------- #

def prepare_params(params, compute_dtype=jnp.float32):
    """Pre-concatenate the fused projection weights ONCE (amortized across calls)
    and cast everything to the compute dtype (bf16 path per review)."""
    e = params["embed_dim"]
    h = params["num_heads"]
    cast = lambda a: jnp.asarray(a, compute_dtype)
    kw, kb = params["k_proj"]
    vw, vb = params["v_proj"]
    prep = {
        "embed_dim": e, "num_heads": h,
        "kv_w": cast(jnp.concatenate([kw, vw], axis=0)),
        "kv_b": cast(jnp.concatenate([kb, vb], axis=0)),
        "out_w": cast(params["out_proj"][0]),
        "out_b": cast(params["out_proj"][1]),
        "q": {}, "qkv": {},
    }
    for task, (qw, qb) in params["q_proj"].items():
        prep["q"][task] = (cast(qw), cast(qb))
        # Fused [3E, E] QKV for the self-attention path (one launch, one read).
        prep["qkv"][task] = (cast(jnp.concatenate([qw, kw, vw], axis=0)),
                             cast(jnp.concatenate([qb, kb, vb], axis=0)))
    return prep


def stylized_bart_attention(prep, hidden_states, key_value_states=None,
                            task_id="0", output_attentions=False):
    """Forward pass of StylizedBartAttention (eval mode; no masks / past-kv input).

    Returns (attn_output [B,T,E], attn_weights [B,H,T,S] or None,
             past_key_value = ([B,H,S,Dh], [B,H,S,Dh]))."""
    embed_dim = prep["embed_dim"]
    num_heads = prep["num_heads"]
    head_dim = embed_dim // num_heads
    scaling = head_dim ** (-0.5)
    dtype = prep["out_w"].dtype

    bsz, tgt_len, _ = hidden_states.shape
    hidden_states = hidden_states.astype(dtype)
    is_cross_attention = key_value_states is not None

    if is_cross_attention:
        kv_in = key_value_states.astype(dtype)
        src_len = kv_in.shape[1]
        qw, qb = prep["q"][str(task_id)]
        (q,) = _fused_linear(hidden_states.reshape(bsz * tgt_len, embed_dim),
                             qw, qb, n_out=1)
        k, v = _fused_linear(kv_in.reshape(bsz * src_len, embed_dim),
                             prep["kv_w"], prep["kv_b"], n_out=2)
    else:
        # Self-attention: fused [3E, E] Q+K+V projection, single read of hidden.
        src_len = tgt_len
        qkvw, qkvb = prep["qkv"][str(task_id)]
        q, k, v = _fused_linear(hidden_states.reshape(bsz * tgt_len, embed_dim),
                                qkvw, qkvb, n_out=3)

    q = q.reshape(bsz, tgt_len, embed_dim)
    k = k.reshape(bsz, src_len, embed_dim)
    v = v.reshape(bsz, src_len, embed_dim)

    # Decoder KV cache in the torch layout [B, H, S, Dh] (only cache consumers
    # pay for this transpose; the attention path below never materializes it).
    past_key_value = (
        k.reshape(bsz, src_len, num_heads, head_dim).transpose(0, 2, 1, 3),
        v.reshape(bsz, src_len, num_heads, head_dim).transpose(0, 2, 1, 3))

    ctx, attn_weights = _attention(q, k, v, scale=scaling, num_heads=num_heads,
                                   head_dim=head_dim,
                                   output_attentions=output_attentions)

    (out,) = _fused_linear(ctx.reshape(bsz * tgt_len, embed_dim),
                           prep["out_w"], prep["out_b"], n_out=1)
    out = out.reshape(bsz, tgt_len, embed_dim)
    return out, attn_weights, past_key_value


# ------------------------------ param init ---------------------------------- #

def init_params(key, embed_dim, num_heads):
    def xavier(k, shape):
        fan_in, fan_out = shape[1], shape[0]
        bound = np.sqrt(6.0 / (fan_in + fan_out))
        return jax.random.uniform(k, shape, jnp.float32, -bound, bound)

    keys = jax.random.split(key, 16)
    q_proj = {}
    for i in range(4):
        w = xavier(keys[i], (embed_dim, embed_dim))
        b = jax.random.normal(keys[4 + i], (embed_dim,), jnp.float32) * 0.02
        q_proj[str(i)] = (w, b)

    k_proj = (xavier(keys[8], (embed_dim, embed_dim)),
              jax.random.normal(keys[9], (embed_dim,), jnp.float32) * 0.02)
    v_proj = (xavier(keys[10], (embed_dim, embed_dim)),
              jax.random.normal(keys[11], (embed_dim,), jnp.float32) * 0.02)
    out_proj = (xavier(keys[12], (embed_dim, embed_dim)),
                jax.random.normal(keys[13], (embed_dim,), jnp.float32) * 0.02)

    return {"embed_dim": embed_dim, "num_heads": num_heads,
            "q_proj": q_proj, "k_proj": k_proj, "v_proj": v_proj,
            "out_proj": out_proj}


# --------------------------- pure-JAX reference ------------------------------ #

def reference_forward(params, hidden_states, key_value_states, task_id="0"):
    embed_dim = params["embed_dim"]
    num_heads = params["num_heads"]
    head_dim = embed_dim // num_heads
    scaling = head_dim ** (-0.5)
    bsz, tgt_len, _ = hidden_states.shape
    kv = key_value_states if key_value_states is not None else hidden_states
    src_len = kv.shape[1]

    qw, qb = params["q_proj"][str(task_id)]
    q = (hidden_states @ qw.T + qb) * scaling
    k = kv @ params["k_proj"][0].T + params["k_proj"][1]
    v = kv @ params["v_proj"][0].T + params["v_proj"][1]

    def sh(x, L):
        return x.reshape(bsz, L, num_heads, head_dim).transpose(0, 2, 1, 3)

    q, k, v = sh(q, tgt_len), sh(k, src_len), sh(v, src_len)
    scores = jnp.einsum("bhtd,bhsd->bhts", q, k)
    probs = jax.nn.softmax(scores, axis=-1)
    out = jnp.einsum("bhts,bhsd->bhtd", probs, v)
    out = out.transpose(0, 2, 1, 3).reshape(bsz, tgt_len, embed_dim)
    out = out @ params["out_proj"][0].T + params["out_proj"][1]
    return out, probs


# ---------------------------------- main ------------------------------------ #

if __name__ == "__main__":
    B, T, S, E, H = 2, 8, 10, 32, 4

    key = jax.random.PRNGKey(0)
    k_param, k_h, k_kv = jax.random.split(key, 3)

    params = init_params(k_param, E, H)
    hidden_states = jax.random.normal(k_h, (B, T, E), jnp.float32)
    key_value_states = jax.random.normal(k_kv, (B, S, E), jnp.float32)

    prep = prepare_params(params)                    # f32 compute path

    # Exact-softmax parity now (Newton-refined reciprocal); tolerance covers
    # f32 MXU accumulation-order wobble on real hardware.
    RTOL, ATOL = 1e-2, 1e-3

    # --- cross-attention, output_attentions=True (weights path exercised) ---
    out, attn_w, past_kv = stylized_bart_attention(
        prep, hidden_states, key_value_states=key_value_states,
        task_id="0", output_attentions=True)
    out = jax.block_until_ready(out)
    attn_w = jax.block_until_ready(attn_w)

    ref_out, ref_w = reference_forward(params, hidden_states, key_value_states, "0")
    np.testing.assert_allclose(np.asarray(out), np.asarray(ref_out),
                               rtol=RTOL, atol=ATOL)
    np.testing.assert_allclose(np.asarray(attn_w), np.asarray(ref_w),
                               rtol=RTOL, atol=ATOL)

    assert out.shape == (B, T, E)
    assert attn_w.shape == (B, H, T, S)
    assert past_kv[0].shape == (B, H, S, E // H)
    assert past_kv[1].shape == (B, H, S, E // H)

    # --- fast path: no attention-weights writeback (default) ---
    out2, attn_w2, _ = stylized_bart_attention(
        prep, hidden_states, key_value_states=key_value_states, task_id="2")
    out2 = jax.block_until_ready(out2)
    assert attn_w2 is None
    ref_out2, _ = reference_forward(params, hidden_states, key_value_states, "2")
    np.testing.assert_allclose(np.asarray(out2), np.asarray(ref_out2),
                               rtol=RTOL, atol=ATOL)

    # --- self-attention path (fused [3E, E] QKV projection) ---
    out3, _, pkv3 = stylized_bart_attention(prep, hidden_states, task_id="1")
    out3 = jax.block_until_ready(out3)
    ref_out3, _ = reference_forward(params, hidden_states, None, "1")
    np.testing.assert_allclose(np.asarray(out3), np.asarray(ref_out3),
                               rtol=RTOL, atol=ATOL)
    assert pkv3[0].shape == (B, H, T, E // H)

    # --- bf16 compute path (bf16 MXU operands, f32 accumulation + softmax) ---
    prep_bf16 = prepare_params(params, jnp.bfloat16)
    out_bf16, _, _ = stylized_bart_attention(
        prep_bf16, hidden_states, key_value_states=key_value_states, task_id="0")
    out_bf16 = jax.block_until_ready(out_bf16)
    np.testing.assert_allclose(np.asarray(jnp.asarray(out_bf16, jnp.float32)),
                               np.asarray(ref_out), rtol=8e-2, atol=8e-2)

    print("KERNEL_OK")
</pallas_src>

<mosaic_0001>
module attributes {stable_mosaic.version = 11 : i64} {
  func.func @_fused_linear_kernel(%arg0: i32, %arg1: memref<16x32xf32, #tpu.memory_space<vmem>>, %arg2: memref<32x32xf32, #tpu.memory_space<vmem>>, %arg3: memref<1x32xf32, #tpu.memory_space<vmem>>, %arg4: memref<16x32xf32, #tpu.memory_space<vmem>>) attributes {dimension_semantics = [#tpu.dimension_semantics<parallel>], iteration_bounds = array<i64: 1>, scalar_prefetch = 0 : i64, scratch_operands = 0 : i64, tpu.core_type = #tpu.core_type<tc>, window_params = [{transform_indices = @transform_0, window_bounds = array<i64: 16, 32>}, {pipeline_mode = #tpu.pipeline_mode<synchronous>, transform_indices = @transform_1, window_bounds = array<i64: 32, 32>}, {pipeline_mode = #tpu.pipeline_mode<synchronous>, transform_indices = @transform_2, window_bounds = array<i64: 1, 32>}, {transform_indices = @transform_3, window_bounds = array<i64: 16, 32>}]} {
    %c0 = arith.constant 0 : index
    %c0_0 = arith.constant 0 : index
    %0 = vector.load %arg1[%c0, %c0_0] : memref<16x32xf32, #tpu.memory_space<vmem>>, vector<16x32xf32>
    %c0_1 = arith.constant 0 : index
    %c0_2 = arith.constant 0 : index
    %1 = vector.load %arg2[%c0_1, %c0_2] : memref<32x32xf32, #tpu.memory_space<vmem>>, vector<32x32xf32>
    %c0_3 = arith.constant 0 : index
    %c0_4 = arith.constant 0 : index
    %2 = vector.load %arg3[%c0_3, %c0_4] : memref<1x32xf32, #tpu.memory_space<vmem>>, vector<1x32xf32>
    %cst = arith.constant dense<0.000000e+00> : vector<16x32xf32>
    %3 = tpu.matmul %0, %1, %cst {dimension_numbers = #tpu.dot_dimension_numbers<[1], [1], [0], [0], [0, 0, 1, 0], [], []>} : vector<16x32xf32>, vector<32x32xf32>, vector<16x32xf32> -> vector<16x32xf32>
    %4 = vector.broadcast %2 : vector<1x32xf32> to vector<16x32xf32>
    %5 = arith.addf %3, %4 : vector<16x32xf32>
    %c0_5 = arith.constant 0 : index
    %c0_6 = arith.constant 0 : index
    %6 = vector.load %arg4[%c0_5, %c0_6] : memref<16x32xf32, #tpu.memory_space<vmem>>, vector<16x32xf32>
    tpu.vector_store %arg4[%c0_5, %c0_6], %5 {strides = array<i32>} : memref<16x32xf32, #tpu.memory_space<vmem>>, vector<16x32xf32>,
    return
  }
  func.func @transform_0(%arg0: i32) -> (i32, i32) {
    %c0_i32 = arith.constant 0 : i32
    %c0_i32_0 = arith.constant 0 : i32
    return %arg0, %c0_i32 : i32, i32
  }
  func.func @transform_1(%arg0: i32) -> (i32, i32) {
    %c0_i32 = arith.constant 0 : i32
    %c0_i32_0 = arith.constant 0 : i32
    %c0_i32_1 = arith.constant 0 : i32
    return %c0_i32, %c0_i32_0 : i32, i32
  }
  func.func @transform_2(%arg0: i32) -> (i32, i32) {
    %c0_i32 = arith.constant 0 : i32
    %c0_i32_0 = arith.constant 0 : i32
    %c0_i32_1 = arith.constant 0 : i32
    return %c0_i32, %c0_i32_0 : i32, i32
  }
  func.func @transform_3(%arg0: i32) -> (i32, i32) {
    %c0_i32 = arith.constant 0 : i32
    %c0_i32_0 = arith.constant 0 : i32
    return %arg0, %c0_i32 : i32, i32
  }
}

</mosaic_0001>

<llo_original>
// kernel: tpu_custom_call.1
$region0: #{tpu_custom_call.1}
  #allocation0 [shape = 'u32[]', space=smem, size = 0x4, offset = 0x4, fixed_abs, tag = 'smem constant byte address 0x4 - core index']
  #allocation1 [shape = 'u32[144,128]{1,0:T(1,128)}', space=vmem, size = 0x12000, scoped, tag = 'internal scratch']
  %s0 = inlined_call_operand.hbm [shape: f32[16,32], index: 0, kind: input, shape index: {}]
  %s1 = inlined_call_operand.hbm [shape: f32[32,32], index: 1, kind: input, shape index: {}]
  %s2 = inlined_call_operand.vmem [shape: f32[1,32], index: 2, kind: input, shape index: {}]
  %s3 = inlined_call_operand.hbm [shape: f32[16,32], index: 3, kind: output, shape index: {}]
  %s4 = sld [smem:[#allocation0]]
  $region30: #{tpu_custom_call.1} parent=0
    _
  %s6 = ssub.s32 1, %s4
  %s7 = scalar_select 0, %s6, %s4
  $region1: #{tpu_custom_call.1} parent=0
    #allocation2 [shape = 'u8[8192]{0}', space=vmem, size = 0x2000, scoped, tag = 'input window, operand 0, single buffered']
    #allocation3 [shape = 's32[1]{0}', space=sflag, size = 0x4, scoped, tag = 'scoped memory for tpu_custom_call.1']
    #allocation4 [shape = 's32[1]{0}', space=sflag, size = 0x4, scoped, tag = 'scoped memory for tpu_custom_call.1']
    #allocation5 [shape = 'u8[16384]{0}', space=vmem, size = 0x4000, scoped, tag = 'input window, operand 1, single buffered']
    #allocation6 [shape = 's32[1]{0}', space=sflag, size = 0x4, scoped, tag = 'scoped memory for tpu_custom_call.1']
    #allocation7 [shape = 'u8[8192]{0}', space=vmem, size = 0x2000, scoped, tag = 'output window, operand 0, single buffered']
    %8 = vsyncpa [#allocation3], 0
    %9 = vsyncpa [#allocation6], 0
    %10 = vsyncpa [#allocation4], 0
    // Predicated region
    $region2: #{tpu_custom_call.1} parent=1 // pred_check
      _
    $region3: #{tpu_custom_call.1} parent=1 // pred_check_branch
      %12 = sbr.rel (0) target = $region5
    $region4: #{tpu_custom_call.1} parent=1 // pred_region
      %s14 = ssub.s32 256, 256
      %15 = vsyncadd [#allocation3], %s14
      %s16 = sshll.u32 [#allocation2], 4
      %s17 = int_to_ptr.vmem [resolvable:$true] %s16
      %22 = dma.hbm_to_vmem [thread:$0]  %s0, 256, %s17, [#allocation3], 128, 128, 8
    $region5: #{tpu_custom_call.1} parent=1 // pred_fallthru
      _
    // Predicated region
    $region6: #{tpu_custom_call.1} parent=1 // pred_check
      _
    $region7: #{tpu_custom_call.1} parent=1 // pred_check_branch
      %24 = sbr.rel (0) target = $region9
    $region8: #{tpu_custom_call.1} parent=1 // pred_region
      %s26 = ssub.s32 512, 512
      %27 = vsyncadd [#allocation6], %s26
      %s28 = sshll.u32 [#allocation5], 4
      %s29 = int_to_ptr.vmem [resolvable:$true] %s28
      %34 = dma.hbm_to_vmem [thread:$0]  %s1, 512, %s29, [#allocation6], 128, 128, 8
    $region9: #{tpu_custom_call.1} parent=1 // pred_fallthru
      _
    // Predicated region
    $region10: #{tpu_custom_call.1} parent=1 // pred_check
      _
    $region11: #{tpu_custom_call.1} parent=1 // pred_check_branch
      %36 = sbr.rel (0) target = $region13
    $region12: #{tpu_custom_call.1} parent=1 // pred_region
      _
    $region13: #{tpu_custom_call.1} parent=1 // pred_fallthru
      _
    // Predicated region
    $region14: #{tpu_custom_call.1} parent=1 // pred_check
      _
    $region15: #{tpu_custom_call.1} parent=1 // pred_check_branch
      %38 = sbr.rel (0) target = $region17
    $region16: #{tpu_custom_call.1} parent=1 // pred_region
      %39 = dma.done [#allocation3], 256
    $region17: #{tpu_custom_call.1} parent=1 // pred_fallthru
      _
    // Predicated region
    $region18: #{tpu_custom_call.1} parent=1 // pred_check
      _
    $region19: #{tpu_custom_call.1} parent=1 // pred_check_branch
      %41 = sbr.rel (0) target = $region21
    $region20: #{tpu_custom_call.1} parent=1 // pred_region
      %42 = dma.done [#allocation6], 512
    $region21: #{tpu_custom_call.1} parent=1 // pred_fallthru
      _
    %v43 = vld [vmem:[#allocation2] sm:$0xff]
    %v44 = vld [vmem:[#allocation2 + $0x8] sm:$0xff]
    %v45 = vld [vmem:[#allocation5] sm:$0xff]
    %v46 = vld [vmem:[#allocation5 + $0x8] sm:$0xff]
    %v47 = vld [vmem:[#allocation5 + $0x10] sm:$0xff]
    %v48 = vld [vmem:[#allocation5 + $0x18] sm:$0xff]
    %v49 = vld [vmem:[%s2] sm:$0x1]
    %v51 = vlaneseq
    %v52 = vshrl.u32 %v51, 7
    %v53 = vsub.s32 0, %v52
    %v54 = vrot.slane %v49, %v53
    %vm56 = vcmask 261120
    %v58 = vsel %vm56, %v43, 0
    %v61 = vsel %vm56, %v44, 0
    %v64 = vsel %vm56, %v45, 0
    %v67 = vsel %vm56, %v46, 0
    %v70 = vsel %vm56, %v47, 0
    %v73 = vsel %vm56, %v48, 0
    %75 = vmatprep.subr.mxu0 0.0
    %76 = vmatpush1.xpose.msra.mxu0 %v64
    %77 = vmatprep.subr.mxu0 0.0
    %78 = vmatpush1.xpose.msra.mxu0 %v67
    %79 = vmatprep.subr.mxu0 0.0
    %80 = vmatpush1.xpose.msra.mxu0 %v70
    %81 = vmatprep.subr.mxu0 0.0
    %82 = vmatpush1.xpose.msra.mxu0 %v73
    %83 = vmatprep.subr.mxu0 0.0
    %84 = vmatpush1.xpose.msra.mxu0 0.0
    %85 = vmatprep.subr.mxu0 0.0
    %86 = vmatpush1.xpose.msra.mxu0 0.0
    %87 = vmatprep.subr.mxu0 0.0
    %88 = vmatpush1.xpose.msra.mxu0 0.0
    %89 = vmatprep.subr.mxu0 0.0
    %90 = vmatpush1.xpose.msra.mxu0 0.0
    %91 = vmatprep.subr.mxu0 0.0
    %92 = vmatpush1.xpose.msra.mxu0 0.0
    %93 = vmatprep.subr.mxu0 0.0
    %94 = vmatpush1.xpose.msra.mxu0 0.0
    %95 = vmatprep.subr.mxu0 0.0
    %96 = vmatpush1.xpose.msra.mxu0 0.0
    %97 = vmatprep.subr.mxu0 0.0
    %98 = vmatpush1.xpose.msra.mxu0 0.0
    %99 = vmatprep.subr.mxu0 0.0
    %100 = vmatpush1.xpose.msra.mxu0 0.0
    %101 = vmatprep.subr.mxu0 0.0
    %102 = vmatpush1.xpose.msra.mxu0 0.0
    %103 = vmatprep.subr.mxu0 0.0
    %104 = vmatpush1.xpose.msra.mxu0 0.0
    %105 = vmatprep.subr.mxu0 0.0
    %106 = vmatpush1.xpose.msra.mxu0 0.0
    %107 = vmatprep.subr.mxu0 0.0
    %108 = vmatpush1.xpose.msra.mxu0 0.0
    %109 = vmatprep.subr.mxu0 0.0
    %110 = vmatpush1.xpose.msra.mxu0 0.0
    %111 = vmatprep.subr.mxu0 0.0
    %112 = vmatpush1.xpose.msra.mxu0 0.0
    %113 = vmatprep.subr.mxu0 0.0
    %114 = vmatpush1.xpose.msra.mxu0 0.0
    %115 = vmatprep.subr.mxu0 0.0
    %116 = vmatpush1.xpose.msra.mxu0 0.0
    %117 = vmatprep.subr.mxu0 0.0
    %118 = vmatpush1.xpose.msra.mxu0 0.0
    %119 = vmatprep.subr.mxu0 0.0
    %120 = vmatpush1.xpose.msra.mxu0 0.0
    %121 = vmatprep.subr.mxu0 0.0
    %122 = vmatpush1.xpose.msra.mxu0 0.0
    %123 = vmatprep.subr.mxu0 0.0
    %124 = vmatpush1.xpose.msra.mxu0 0.0
    %125 = vmatprep.subr.mxu0 0.0
    %126 = vmatpush1.xpose.msra.mxu0 0.0
    %127 = vmatprep.subr.mxu0 0.0
    %128 = vmatpush1.xpose.msra.mxu0 0.0
    %129 = vmatprep.subr.mxu0 0.0
    %130 = vmatpush1.xpose.msra.mxu0 0.0
    %131 = vmatprep.subr.mxu0 0.0
    %132 = vmatpush1.xpose.msra.mxu0 0.0
    %133 = vmatprep.subr.mxu0 0.0
    %134 = vmatpush1.xpose.msra.mxu0 0.0
    %135 = vmatprep.subr.mxu0 0.0
    %136 = vmatpush1.xpose.msra.mxu0 0.0
    %137 = vmatprep.subr.mxu0 0.0
    %138 = vmatpush1.xpose.msra.mxu0 0.0
    %139 = vmatprep.mubr.f32.mxu0 0.0
    %140 = vmatmul.mubr.f32.gmra.mrb[0].mxu0 %v58
    %v141 = vpop.f32.mrb[0].mxu0
    %v142 = vadd.f32 %v54, %v141
    %v143 = vpop.f32.mrb[0].mxu0
    %144 = vmatprep.mubr.f32.mxu0 0.0
    %145 = vmatmul.mubr.f32.gmra.mrb[0].mxu0 %v61
    %v146 = vpop.f32.mrb[0].mxu0
    %v147 = vadd.f32 %v54, %v146
    %v148 = vpop.f32.mrb[0].mxu0
    %149 = vdwg.mxu0
    %150 = vst.msk [vmem:[#allocation7] sm:$0xff] %vm56, %v142
    %151 = vst.msk [vmem:[#allocation7 + $0x8] sm:$0xff] %vm56, %v147
    // Predicated region
    $region22: #{tpu_custom_call.1} parent=1 // pred_check
      _
    $region23: #{tpu_custom_call.1} parent=1 // pred_check_branch
      %153 = sbr.rel (0) target = $region25
    $region24: #{tpu_custom_call.1} parent=1 // pred_region
      %s155 = ssub.s32 256, 256
      %156 = vsyncadd [#allocation4], %s155
      %s157 = sshll.u32 [#allocation7], 4
      %s158 = int_to_ptr.vmem [resolvable:$true] %s157
      %163 = dma.vmem_to_hbm [thread:$0]  %s158, 256, %s3, [#allocation4], 128, 128, 8
    $region25: #{tpu_custom_call.1} parent=1 // pred_fallthru
      _
    // Predicated region
    $region26: #{tpu_custom_call.1} parent=1 // pred_check
      _
    $region27: #{tpu_custom_call.1} parent=1 // pred_check_branch
      %165 = sbr.rel (0) target = $region29
    $region28: #{tpu_custom_call.1} parent=1 // pred_region
      %166 = dma.done [#allocation4], 256
    $region29: #{tpu_custom_call.1} parent=1 // pred_fallthru
      _
    %167 = vsyncpa [#allocation3], 1
    %168 = vsyncpa [#allocation6], 1
    %169 = vsyncpa [#allocation4], 1

</llo_original>
